<compile_context>
chip_gen: v6e
topology: v6e:2x2x1
jax: 0.10.0
libtpu: 0.0.40
codegen_flags: <defaults>
</compile_context>

<pallas_src>
import functools

import jax
import jax.numpy as jnp
from jax.experimental import pallas as pl
from jax.experimental.pallas import tpu as pltpu

LANE = 128


def _round_up(n, m):
    return ((n + m - 1) // m) * m


def _cdiv(a, b):
    return (a + b - 1) // b


# --------------------------------------------------------------------------
# Kernel: one grid program handles a (Bb, Fp) row-tile of x through the whole
# 3-layer MLP.  Weights/biases are VMEM-resident (constant index_map).
# --------------------------------------------------------------------------
def deep_fcnn_kernel(x_ref, w0t_ref, b0_ref, w1t_ref, b1_ref, w5t_ref, b5_ref,
                     o_ref):
    x = x_ref[...]                                        # (Bb, Fp) compute dtype

    # fc0 -> relu   (Fp -> H0p), f32 accumulate, f32 bias/ReLU
    h = jnp.dot(x, w0t_ref[...], preferred_element_type=jnp.float32)
    h = jnp.maximum(h + b0_ref[...], 0.0)

    # fc1 -> relu   (H0p -> H1p)
    h = jnp.dot(h.astype(w1t_ref.dtype), w1t_ref[...],
                preferred_element_type=jnp.float32)
    h = jnp.maximum(h + b1_ref[...], 0.0)

    # fc5           (H1p -> Tp), single lane-dense (Bb, Tp) store
    o = jnp.dot(h.astype(w5t_ref.dtype), w5t_ref[...],
                preferred_element_type=jnp.float32) + b5_ref[...]
    o_ref[...] = o.astype(o_ref.dtype)


# --------------------------------------------------------------------------
# One-time parameter prep (transpose + zero-pad + cast).  Weights are static
# across forward calls, so this stays out of the per-call path.
# --------------------------------------------------------------------------
def prepare_params(w0, b0, w1, b1, w5, b5, feature_dim, targets_dim,
                   compute_dtype=jnp.bfloat16):
    Fdim = feature_dim[0] * feature_dim[1] * feature_dim[2]
    Tdim = targets_dim[0] * targets_dim[1]
    H0 = w0.shape[0]
    H1 = w1.shape[0]

    Fp = _round_up(Fdim, LANE)
    Tp = _round_up(Tdim, LANE)
    H0p = _round_up(H0, LANE)
    H1p = _round_up(H1, LANE)

    w0_f = jnp.asarray(w0, jnp.float32)
    w1_f = jnp.asarray(w1, jnp.float32)
    w5_f = jnp.asarray(w5, jnp.float32)

    # Pre-transposed to (in, out), zero-padded so padded lanes are inert.
    w0t = jnp.zeros((Fp, H0p), compute_dtype).at[:Fdim, :H0].set(
        w0_f.T.astype(compute_dtype))
    w1t = jnp.zeros((H0p, H1p), compute_dtype).at[:H0, :H1].set(
        w1_f.T.astype(compute_dtype))
    w5t = jnp.zeros((H1p, Tp), compute_dtype).at[:H1, :Tdim].set(
        w5_f.T.astype(compute_dtype))

    # Biases stay f32 (bias-add / ReLU done in f32); padded entries are 0.
    b0r = jnp.zeros((1, H0p), jnp.float32).at[0, :H0].set(
        jnp.asarray(b0, jnp.float32))
    b1r = jnp.zeros((1, H1p), jnp.float32).at[0, :H1].set(
        jnp.asarray(b1, jnp.float32))
    b5r = jnp.zeros((1, Tp), jnp.float32).at[0, :Tdim].set(
        jnp.asarray(b5, jnp.float32))

    return (w0t, b0r, w1t, b1r, w5t, b5r)


# --------------------------------------------------------------------------
# Forward pass (jitted).  params from prepare_params().
# --------------------------------------------------------------------------
@functools.partial(jax.jit,
                   static_argnames=("feature_dim", "targets_dim", "block_b"))
def deep_fcnn_apply(data, params, feature_dim, targets_dim, block_b=256):
    w0t, b0r, w1t, b1r, w5t, b5r = params
    compute_dtype = w0t.dtype

    Fdim = feature_dim[0] * feature_dim[1] * feature_dim[2]
    Tdim = targets_dim[0] * targets_dim[1]
    Fp, H0p = w0t.shape
    H1p, Tp = w5t.shape

    x = jnp.asarray(data).reshape(-1, Fdim)
    B = x.shape[0]

    # --- batch tile selection -------------------------------------------
    Bb = min(_round_up(B, 8), _round_up(block_b, 8))
    # Ensure >= 2 grid programs when there is enough work, so the "parallel"
    # axis can shard across v7x's 2 TensorCores.
    if B >= 16 and _cdiv(B, Bb) < 2:
        Bb = _round_up(_cdiv(B, 2), 8)
    Bp = _round_up(B, Bb)

    # --- x staging: skip the padded copy when already aligned ------------
    if Bp == B and Fp == Fdim:
        x_p = x.astype(compute_dtype)                    # cast only, no pad copy
    else:
        x_p = jnp.zeros((Bp, Fp), compute_dtype).at[:B, :Fdim].set(
            x.astype(compute_dtype))

    grid = (Bp // Bb,)
    resident = dict(pipeline_mode=pl.Buffered(1))        # constant index -> 1 buffer

    out = pl.pallas_call(
        deep_fcnn_kernel,
        out_shape=jax.ShapeDtypeStruct((Bp, Tp), jnp.float32),
        grid_spec=pltpu.PrefetchScalarGridSpec(
            num_scalar_prefetch=0,
            grid=grid,
            in_specs=[
                pl.BlockSpec((Bb, Fp), lambda i: (i, 0)),             # x row tile
                pl.BlockSpec((Fp, H0p), lambda i: (0, 0), **resident),  # W0^T
                pl.BlockSpec((1, H0p), lambda i: (0, 0), **resident),   # b0
                pl.BlockSpec((H0p, H1p), lambda i: (0, 0), **resident),  # W1^T
                pl.BlockSpec((1, H1p), lambda i: (0, 0), **resident),   # b1
                pl.BlockSpec((H1p, Tp), lambda i: (0, 0), **resident),  # W5^T
                pl.BlockSpec((1, Tp), lambda i: (0, 0), **resident),    # b5
            ],
            out_specs=pl.BlockSpec((Bb, Tp), lambda i: (i, 0)),
        ),
        compiler_params=pltpu.CompilerParams(
            dimension_semantics=("parallel",),
        ),
    )(x_p, w0t, b0r, w1t, b1r, w5t, b5r)

    return out[:B, :Tdim].reshape(B, targets_dim[0], targets_dim[1])


def deep_fcnn(data, w0, b0, w1, b1, w5, b5, feature_dim, targets_dim,
              *, compute_dtype=jnp.bfloat16, block_b=256):
    """Convenience: prep + apply in one call (prefer caching prepare_params)."""
    params = prepare_params(w0, b0, w1, b1, w5, b5, feature_dim, targets_dim,
                            compute_dtype=compute_dtype)
    return deep_fcnn_apply(data, params, feature_dim, targets_dim, block_b)


def deep_fcnn_ref(data, w0, b0, w1, b1, w5, b5, feature_dim, targets_dim):
    """Pure-JAX f32 reference mirroring the PyTorch forward."""
    Fdim = feature_dim[0] * feature_dim[1] * feature_dim[2]
    hp = jax.lax.Precision.HIGHEST
    x = jnp.asarray(data, jnp.float32).reshape(-1, Fdim)
    x = jnp.maximum(jnp.dot(x, w0.T, precision=hp) + b0, 0.0)
    x = jnp.maximum(jnp.dot(x, w1.T, precision=hp) + b1, 0.0)
    x = jnp.dot(x, w5.T, precision=hp) + b5
    return x.reshape(-1, targets_dim[0], targets_dim[1])


if __name__ == "__main__":
    key = jax.random.PRNGKey(0)

    # feature_dim / targets_dim consistent with the module's 3D input, 2D output
    feature_dim = (4, 16, 16)        # flattened F = 1024
    targets_dim = (8, 16)            # flattened T = 128
    B = 16
    Fdim = feature_dim[0] * feature_dim[1] * feature_dim[2]
    Tdim = targets_dim[0] * targets_dim[1]
    H0, H1 = 32, 64                  # fixed by the module definition

    ks = jax.random.split(key, 7)
    data = jax.random.normal(ks[0], (B,) + feature_dim, dtype=jnp.float32)

    # PyTorch nn.Linear-style init: U(-1/sqrt(fan_in), 1/sqrt(fan_in))
    def linear_params(kw, kb, fan_in, fan_out):
        bound = 1.0 / (fan_in ** 0.5)
        w = jax.random.uniform(kw, (fan_out, fan_in), jnp.float32, -bound, bound)
        b = jax.random.uniform(kb, (fan_out,), jnp.float32, -bound, bound)
        return w, b

    w0, b0 = linear_params(ks[1], ks[2], Fdim, H0)
    w1, b1 = linear_params(ks[3], ks[4], H0, H1)
    w5, b5 = linear_params(ks[5], ks[6], H1, Tdim)

    ref = deep_fcnn_ref(data, w0, b0, w1, b1, w5, b5, feature_dim, targets_dim)

    # 1) f32 operand path: tight check of kernel structure / padding.
    params_f32 = prepare_params(w0, b0, w1, b1, w5, b5, feature_dim,
                                targets_dim, compute_dtype=jnp.float32)
    out_f32 = deep_fcnn_apply(data, params_f32, feature_dim, targets_dim)
    out_f32 = jax.block_until_ready(out_f32)
    assert out_f32.shape == (B, targets_dim[0], targets_dim[1])
    assert jnp.allclose(out_f32, ref, atol=2e-3, rtol=2e-3), \
        "f32 kernel mismatch vs reference"

    # 2) bf16 operand path (default / fast): f32 accumulation, looser tolerance
    #    to cover bf16 rounding on the K=1024 first matmul.
    params_bf16 = prepare_params(w0, b0, w1, b1, w5, b5, feature_dim,
                                 targets_dim, compute_dtype=jnp.bfloat16)
    out_bf16 = deep_fcnn_apply(data, params_bf16, feature_dim, targets_dim)
    out_bf16 = jax.block_until_ready(out_bf16)
    assert out_bf16.shape == (B, targets_dim[0], targets_dim[1])
    assert jnp.allclose(out_bf16, ref, atol=3e-2, rtol=3e-2), \
        "bf16 kernel mismatch vs reference"

    print("KERNEL_OK")
</pallas_src>

<mosaic_0001>
module attributes {stable_mosaic.version = 11 : i64} {
  func.func @deep_fcnn_kernel(%arg0: i32, %arg1: memref<8x1024xf32, #tpu.memory_space<vmem>>, %arg2: memref<1024x128xf32, #tpu.memory_space<vmem>>, %arg3: memref<1x128xf32, #tpu.memory_space<vmem>>, %arg4: memref<128x128xf32, #tpu.memory_space<vmem>>, %arg5: memref<1x128xf32, #tpu.memory_space<vmem>>, %arg6: memref<128x128xf32, #tpu.memory_space<vmem>>, %arg7: memref<1x128xf32, #tpu.memory_space<vmem>>, %arg8: memref<8x128xf32, #tpu.memory_space<vmem>>) attributes {dimension_semantics = [#tpu.dimension_semantics<parallel>], iteration_bounds = array<i64: 2>, scalar_prefetch = 0 : i64, scratch_operands = 0 : i64, tpu.core_type = #tpu.core_type<tc>, window_params = [{transform_indices = @transform_0, window_bounds = array<i64: 8, 1024>}, {pipeline_mode = #tpu.pipeline_mode<synchronous>, transform_indices = @transform_1, window_bounds = array<i64: 1024, 128>}, {pipeline_mode = #tpu.pipeline_mode<synchronous>, transform_indices = @transform_2, window_bounds = array<i64: 1, 128>}, {pipeline_mode = #tpu.pipeline_mode<synchronous>, transform_indices = @transform_3, window_bounds = array<i64: 128, 128>}, {pipeline_mode = #tpu.pipeline_mode<synchronous>, transform_indices = @transform_4, window_bounds = array<i64: 1, 128>}, {pipeline_mode = #tpu.pipeline_mode<synchronous>, transform_indices = @transform_5, window_bounds = array<i64: 128, 128>}, {pipeline_mode = #tpu.pipeline_mode<synchronous>, transform_indices = @transform_6, window_bounds = array<i64: 1, 128>}, {transform_indices = @transform_7, window_bounds = array<i64: 8, 128>}]} {
    %c0 = arith.constant 0 : index
    %c0_0 = arith.constant 0 : index
    %0 = vector.load %arg1[%c0, %c0_0] : memref<8x1024xf32, #tpu.memory_space<vmem>>, vector<8x1024xf32>
    %c0_1 = arith.constant 0 : index
    %c0_2 = arith.constant 0 : index
    %1 = vector.load %arg2[%c0_1, %c0_2] : memref<1024x128xf32, #tpu.memory_space<vmem>>, vector<1024x128xf32>
    %cst = arith.constant dense<0.000000e+00> : vector<8x128xf32>
    %2 = tpu.matmul %0, %1, %cst {dimension_numbers = #tpu.dot_dimension_numbers<[1], [0], [0], [1], [0, 0, 1, 1], [], []>} : vector<8x1024xf32>, vector<1024x128xf32>, vector<8x128xf32> -> vector<8x128xf32>
    %c0_3 = arith.constant 0 : index
    %c0_4 = arith.constant 0 : index
    %3 = vector.load %arg3[%c0_3, %c0_4] : memref<1x128xf32, #tpu.memory_space<vmem>>, vector<1x128xf32>
    %4 = vector.broadcast %3 : vector<1x128xf32> to vector<8x128xf32>
    %5 = arith.addf %2, %4 : vector<8x128xf32>
    %cst_5 = arith.constant 0.000000e+00 : f32
    %6 = vector.broadcast %cst_5 : f32 to vector<8x128xf32>
    %7 = arith.maximumf %5, %6 : vector<8x128xf32>
    %c0_6 = arith.constant 0 : index
    %c0_7 = arith.constant 0 : index
    %8 = vector.load %arg4[%c0_6, %c0_7] : memref<128x128xf32, #tpu.memory_space<vmem>>, vector<128x128xf32>
    %cst_8 = arith.constant dense<0.000000e+00> : vector<8x128xf32>
    %9 = tpu.matmul %7, %8, %cst_8 {dimension_numbers = #tpu.dot_dimension_numbers<[1], [0], [0], [1], [0, 0, 1, 1], [], []>} : vector<8x128xf32>, vector<128x128xf32>, vector<8x128xf32> -> vector<8x128xf32>
    %c0_9 = arith.constant 0 : index
    %c0_10 = arith.constant 0 : index
    %10 = vector.load %arg5[%c0_9, %c0_10] : memref<1x128xf32, #tpu.memory_space<vmem>>, vector<1x128xf32>
    %11 = vector.broadcast %10 : vector<1x128xf32> to vector<8x128xf32>
    %12 = arith.addf %9, %11 : vector<8x128xf32>
    %cst_11 = arith.constant 0.000000e+00 : f32
    %13 = vector.broadcast %cst_11 : f32 to vector<8x128xf32>
    %14 = arith.maximumf %12, %13 : vector<8x128xf32>
    %c0_12 = arith.constant 0 : index
    %c0_13 = arith.constant 0 : index
    %15 = vector.load %arg6[%c0_12, %c0_13] : memref<128x128xf32, #tpu.memory_space<vmem>>, vector<128x128xf32>
    %cst_14 = arith.constant dense<0.000000e+00> : vector<8x128xf32>
    %16 = tpu.matmul %14, %15, %cst_14 {dimension_numbers = #tpu.dot_dimension_numbers<[1], [0], [0], [1], [0, 0, 1, 1], [], []>} : vector<8x128xf32>, vector<128x128xf32>, vector<8x128xf32> -> vector<8x128xf32>
    %c0_15 = arith.constant 0 : index
    %c0_16 = arith.constant 0 : index
    %17 = vector.load %arg7[%c0_15, %c0_16] : memref<1x128xf32, #tpu.memory_space<vmem>>, vector<1x128xf32>
    %18 = vector.broadcast %17 : vector<1x128xf32> to vector<8x128xf32>
    %19 = arith.addf %16, %18 : vector<8x128xf32>
    %c0_17 = arith.constant 0 : index
    %c0_18 = arith.constant 0 : index
    %20 = vector.load %arg8[%c0_17, %c0_18] : memref<8x128xf32, #tpu.memory_space<vmem>>, vector<8x128xf32>
    tpu.vector_store %arg8[%c0_17, %c0_18], %19 {strides = array<i32>} : memref<8x128xf32, #tpu.memory_space<vmem>>, vector<8x128xf32>,
    return
  }
  func.func @transform_0(%arg0: i32) -> (i32, i32) {
    %c0_i32 = arith.constant 0 : i32
    %c0_i32_0 = arith.constant 0 : i32
    return %arg0, %c0_i32 : i32, i32
  }
  func.func @transform_1(%arg0: i32) -> (i32, i32) {
    %c0_i32 = arith.constant 0 : i32
    %c0_i32_0 = arith.constant 0 : i32
    %c0_i32_1 = arith.constant 0 : i32
    return %c0_i32, %c0_i32_0 : i32, i32
  }
  func.func @transform_2(%arg0: i32) -> (i32, i32) {
    %c0_i32 = arith.constant 0 : i32
    %c0_i32_0 = arith.constant 0 : i32
    %c0_i32_1 = arith.constant 0 : i32
    return %c0_i32, %c0_i32_0 : i32, i32
  }
  func.func @transform_3(%arg0: i32) -> (i32, i32) {
    %c0_i32 = arith.constant 0 : i32
    %c0_i32_0 = arith.constant 0 : i32
    %c0_i32_1 = arith.constant 0 : i32
    return %c0_i32, %c0_i32_0 : i32, i32
  }
  func.func @transform_4(%arg0: i32) -> (i32, i32) {
    %c0_i32 = arith.constant 0 : i32
    %c0_i32_0 = arith.constant 0 : i32
    %c0_i32_1 = arith.constant 0 : i32
    return %c0_i32, %c0_i32_0 : i32, i32
  }
  func.func @transform_5(%arg0: i32) -> (i32, i32) {
    %c0_i32 = arith.constant 0 : i32
    %c0_i32_0 = arith.constant 0 : i32
    %c0_i32_1 = arith.constant 0 : i32
    return %c0_i32, %c0_i32_0 : i32, i32
  }
  func.func @transform_6(%arg0: i32) -> (i32, i32) {
    %c0_i32 = arith.constant 0 : i32
    %c0_i32_0 = arith.constant 0 : i32
    %c0_i32_1 = arith.constant 0 : i32
    return %c0_i32, %c0_i32_0 : i32, i32
  }
  func.func @transform_7(%arg0: i32) -> (i32, i32) {
    %c0_i32 = arith.constant 0 : i32
    %c0_i32_0 = arith.constant 0 : i32
    return %arg0, %c0_i32 : i32, i32
  }
}

</mosaic_0001>

<llo_original>
// kernel: deep_fcnn_apply.1
$region0: #{deep_fcnn_apply.1}
  #allocation0 [shape = 'u32[]', space=smem, size = 0x4, offset = 0x4, fixed_abs, tag = 'smem constant byte address 0x4 - core index']
  #allocation1 [shape = 'u32[144,128]{1,0:T(1,128)}', space=vmem, size = 0x12000, scoped, tag = 'internal scratch']
  %s0 = inlined_call_operand.vmem [shape: f32[16,1024], index: 0, kind: input, shape index: {}]
  %s1 = inlined_call_operand.vmem [shape: f32[1024,128], index: 1, kind: input, shape index: {}]
  %s2 = inlined_call_operand.vmem [shape: f32[1,128], index: 2, kind: input, shape index: {}]
  %s3 = inlined_call_operand.vmem [shape: f32[128,128], index: 3, kind: input, shape index: {}]
  %s4 = inlined_call_operand.hbm [shape: f32[1,128], index: 4, kind: input, shape index: {}]
  %s5 = inlined_call_operand.hbm [shape: f32[128,128], index: 5, kind: input, shape index: {}]
  %s6 = inlined_call_operand.hbm [shape: f32[1,128], index: 6, kind: input, shape index: {}]
  %s7 = inlined_call_operand.vmem [shape: f32[16,128], index: 7, kind: output, shape index: {}]
  %s8 = sld [smem:[#allocation0]]
  $region73: #{deep_fcnn_apply.1} parent=0
    _
  %s10 = ssub.s32 1, %s8
  %s11 = scalar_select 0, %s10, %s8
  $region1: #{deep_fcnn_apply.1} parent=0
    #allocation2 [shape = 'u8[512]{0}', space=vmem, size = 0x400, scoped, tag = 'input window, operand 4, single buffered']
    #allocation3 [shape = 's32[2]{0}', space=sflag, size = 0x8, scoped, tag = 'scoped memory for deep_fcnn_apply.1']
    #allocation4 [shape = 'u8[65536]{0}', space=vmem, size = 0x10000, scoped, tag = 'input window, operand 5, single buffered']
    #allocation5 [shape = 's32[1]{0}', space=sflag, size = 0x4, scoped, tag = 'scoped memory for deep_fcnn_apply.1']
    #allocation6 [shape = 'u8[512]{0}', space=vmem, size = 0x400, scoped, tag = 'input window, operand 6, single buffered']
    %12 = vsyncpa [#allocation3], 0
    %13 = vsyncpa [#allocation5], 0
    loop: start=0, step=1, limit=4
    $region2: #{deep_fcnn_apply.1} parent=1 // loop_pre_header
      _
    $region3: #{deep_fcnn_apply.1} parent=1 // loop_header
      %s15 = sphi 0, %s19
      %p16 = scmp.ge.s32.totalorder %s15, 4
      %s25 = sphi 0, %s27
      %s28 = sphi 0, %s25
      %s29 = sphi 0, %s28
      %s45 = sphi 0, %s29
      %s49 = sphi 0, %s49
      %s51 = sphi 0, %s49
      %s52 = sphi 0, %s51
      %s66 = sphi 0, %s52
      %s70 = sphi 0, %s70
      %s72 = sphi 0, %s70
      %s73 = sphi 0, %s72
      %s87 = sphi 0, %s73
      %s91 = sphi 0, %s91
      %s93 = sphi 0, %s91
      %s94 = sphi 0, %s93
      %s108 = sphi 0, %s94
      %s112 = sphi 0, %s112
      %s114 = sphi 0, %s112
      %s115 = sphi 0, %s114
      %s129 = sphi 0, %s115
      %s133 = sphi 0, %s133
      %s135 = sphi 0, %s133
      %s136 = sphi 0, %s135
      %s150 = sphi 0, %s136
      %s154 = sphi 0, %s154
      %s156 = sphi 0, %s154
      %s157 = sphi 0, %s156
      %s171 = sphi 0, %s157
      %s177 = sphi 0, %s179
      %s180 = sphi 0, %s177
      %s181 = sphi 0, %s180
      %s197 = sphi 0, %s181
    $region4: #{deep_fcnn_apply.1} parent=1 // loop_header_branch
      %18 = sbr.rel (%p16) target = $region8
    $region5: #{deep_fcnn_apply.1} parent=1 // loop_body
      %s20 = ssub.s32 %s15, 1
      %s21 = ssub.s32 %s15, 2
      %s22 = sadd.s32 %s15, 1
      %s23 = ssub.s32 %s15, %s22
      %p24 = scmp.eq.s32.totalorder %s23, 0
      %s26 = sadd.s32 %s25, 1
      %s27 = scalar_select %p24, %s25, %s26
      %p30 = pneg %p24
      %p31 = scmp.eq.s32.totalorder %s15, 1
      %p32 = por %p30, %p31
      %p33 = scmp.ne.s32.totalorder %s25, %s28
      %p34 = scmp.eq.s32.totalorder %s15, 0
      %p35 = por %p33, %p34
      %p36 = scmp.ne.s32.totalorder %s25, %s28
      %p37 = scmp.eq.s32.totalorder %s20, 1
      %p38 = por %p36, %p37
      %p39 = scmp.ne.s32.totalorder %s28, %s29
      %p40 = scmp.eq.s32.totalorder %s20, 0
      %p41 = por %p39, %p40
      %p42 = scmp.ne.s32.totalorder %s28, %s29
      %p43 = scmp.eq.s32.totalorder %s21, 1
      %p44 = por %p42, %p43
      %p46 = scmp.ne.s32.totalorder %s29, %s45
      %p47 = scmp.eq.s32.totalorder %s21, 0
      %p48 = por %p46, %p47
      %s50 = sadd.s32 %s49, 1
      %p53 = scmp.eq.s32.totalorder %s15, 1
      %p54 = scmp.ne.s32.totalorder %s49, %s51
      %p55 = scmp.eq.s32.totalorder %s15, 0
      %p56 = por %p54, %p55
      %p57 = scmp.ne.s32.totalorder %s49, %s51
      %p58 = scmp.eq.s32.totalorder %s20, 1
      %p59 = por %p57, %p58
      %p60 = scmp.ne.s32.totalorder %s51, %s52
      %p61 = scmp.eq.s32.totalorder %s20, 0
      %p62 = por %p60, %p61
      %p63 = scmp.ne.s32.totalorder %s51, %s52
      %p64 = scmp.eq.s32.totalorder %s21, 1
      %p65 = por %p63, %p64
      %p67 = scmp.ne.s32.totalorder %s52, %s66
      %p68 = scmp.eq.s32.totalorder %s21, 0
      %p69 = por %p67, %p68
      %s71 = sadd.s32 %s70, 1
      %p74 = scmp.eq.s32.totalorder %s15, 1
      %p75 = scmp.ne.s32.totalorder %s70, %s72
      %p76 = scmp.eq.s32.totalorder %s15, 0
      %p77 = por %p75, %p76
      %p78 = scmp.ne.s32.totalorder %s70, %s72
      %p79 = scmp.eq.s32.totalorder %s20, 1
      %p80 = por %p78, %p79
      %p81 = scmp.ne.s32.totalorder %s72, %s73
      %p82 = scmp.eq.s32.totalorder %s20, 0
      %p83 = por %p81, %p82
      %p84 = scmp.ne.s32.totalorder %s72, %s73
      %p85 = scmp.eq.s32.totalorder %s21, 1
      %p86 = por %p84, %p85
      %p88 = scmp.ne.s32.totalorder %s73, %s87
      %p89 = scmp.eq.s32.totalorder %s21, 0
      %p90 = por %p88, %p89
      %s92 = sadd.s32 %s91, 1
      %p95 = scmp.eq.s32.totalorder %s15, 1
      %p96 = scmp.ne.s32.totalorder %s91, %s93
      %p97 = scmp.eq.s32.totalorder %s15, 0
      %p98 = por %p96, %p97
      %p99 = scmp.ne.s32.totalorder %s91, %s93
      %p100 = scmp.eq.s32.totalorder %s20, 1
      %p101 = por %p99, %p100
      %p102 = scmp.ne.s32.totalorder %s93, %s94
      %p103 = scmp.eq.s32.totalorder %s20, 0
      %p104 = por %p102, %p103
      %p105 = scmp.ne.s32.totalorder %s93, %s94
      %p106 = scmp.eq.s32.totalorder %s21, 1
      %p107 = por %p105, %p106
      %p109 = scmp.ne.s32.totalorder %s94, %s108
      %p110 = scmp.eq.s32.totalorder %s21, 0
      %p111 = por %p109, %p110
      %s113 = sadd.s32 %s112, 1
      %p116 = scmp.eq.s32.totalorder %s15, 1
      %p117 = scmp.ne.s32.totalorder %s112, %s114
      %p118 = scmp.eq.s32.totalorder %s15, 0
      %p119 = por %p117, %p118
      %p120 = scmp.ne.s32.totalorder %s112, %s114
      %p121 = scmp.eq.s32.totalorder %s20, 1
      %p122 = por %p120, %p121
      %p123 = scmp.ne.s32.totalorder %s114, %s115
      %p124 = scmp.eq.s32.totalorder %s20, 0
      %p125 = por %p123, %p124
      %p126 = scmp.ne.s32.totalorder %s114, %s115
      %p127 = scmp.eq.s32.totalorder %s21, 1
      %p128 = por %p126, %p127
      %p130 = scmp.ne.s32.totalorder %s115, %s129
      %p131 = scmp.eq.s32.totalorder %s21, 0
      %p132 = por %p130, %p131
      %s134 = sadd.s32 %s133, 1
      %p137 = scmp.eq.s32.totalorder %s15, 1
      %p138 = scmp.ne.s32.totalorder %s133, %s135
      %p139 = scmp.eq.s32.totalorder %s15, 0
      %p140 = por %p138, %p139
      %p141 = scmp.ne.s32.totalorder %s133, %s135
      %p142 = scmp.eq.s32.totalorder %s20, 1
      %p143 = por %p141, %p142
      %p144 = scmp.ne.s32.totalorder %s135, %s136
      %p145 = scmp.eq.s32.totalorder %s20, 0
      %p146 = por %p144, %p145
      %p147 = scmp.ne.s32.totalorder %s135, %s136
      %p148 = scmp.eq.s32.totalorder %s21, 1
      %p149 = por %p147, %p148
      %p151 = scmp.ne.s32.totalorder %s136, %s150
      %p152 = scmp.eq.s32.totalorder %s21, 0
      %p153 = por %p151, %p152
      %s155 = sadd.s32 %s154, 1
      %p158 = scmp.eq.s32.totalorder %s15, 1
      %p159 = scmp.ne.s32.totalorder %s154, %s156
      %p160 = scmp.eq.s32.totalorder %s15, 0
      %p161 = por %p159, %p160
      %p162 = scmp.ne.s32.totalorder %s154, %s156
      %p163 = scmp.eq.s32.totalorder %s20, 1
      %p164 = por %p162, %p163
      %p165 = scmp.ne.s32.totalorder %s156, %s157
      %p166 = scmp.eq.s32.totalorder %s20, 0
      %p167 = por %p165, %p166
      %p168 = scmp.ne.s32.totalorder %s156, %s157
      %p169 = scmp.eq.s32.totalorder %s21, 1
      %p170 = por %p168, %p169
      %p172 = scmp.ne.s32.totalorder %s157, %s171
      %p173 = scmp.eq.s32.totalorder %s21, 0
      %p174 = por %p172, %p173
      %s175 = ssub.s32 %s15, %s22
      %p176 = scmp.eq.s32.totalorder %s175, 0
      %s178 = sadd.s32 %s177, 1
      %s179 = scalar_select %p176, %s177, %s178
      %p182 = pneg %p176
      %p183 = scmp.eq.s32.totalorder %s15, 1
      %p184 = por %p182, %p183
      %p185 = scmp.ne.s32.totalorder %s177, %s180
      %p186 = scmp.eq.s32.totalorder %s15, 0
      %p187 = por %p185, %p186
      %p188 = scmp.ne.s32.totalorder %s177, %s180
      %p189 = scmp.eq.s32.totalorder %s20, 1
      %p190 = por %p188, %p189
      %p191 = scmp.ne.s32.totalorder %s180, %s181
      %p192 = scmp.eq.s32.totalorder %s20, 0
      %p193 = por %p191, %p192
      %p194 = scmp.ne.s32.totalorder %s180, %s181
      %p195 = scmp.eq.s32.totalorder %s21, 1
      %p196 = por %p194, %p195
      %p198 = scmp.ne.s32.totalorder %s181, %s197
      %p199 = scmp.eq.s32.totalorder %s21, 0
      %p200 = por %p198, %p199
      %p201 = scmp.le.s32.totalorder 1, %s15
      %p202 = scmp.lt.s32.totalorder %s15, 3
      %p203 = pnand %p201, %p202
      %p204 = pneg %p203
      // Predicated region
      $region9: #{deep_fcnn_apply.1} parent=5 // pred_check
        _
      $region10: #{deep_fcnn_apply.1} parent=5 // pred_check_branch
        %206 = sbr.rel (%p203) target = $region12
      $region11: #{deep_fcnn_apply.1} parent=5 // pred_region
        %s207 = ssub.s32 %s15, 1
        // Predicated region
        $region13: #{deep_fcnn_apply.1} parent=11 // pred_check
          %p208 = pneg %p62
        $region14: #{deep_fcnn_apply.1} parent=11 // pred_check_branch
          %210 = sbr.rel (%p208) target = $region16
        $region15: #{deep_fcnn_apply.1} parent=11 // pred_region
          _
        $region16: #{deep_fcnn_apply.1} parent=11 // pred_fallthru
          _
        // Predicated region
        $region17: #{deep_fcnn_apply.1} parent=11 // pred_check
          %p211 = pneg %p83
        $region18: #{deep_fcnn_apply.1} parent=11 // pred_check_branch
          %213 = sbr.rel (%p211) target = $region20
        $region19: #{deep_fcnn_apply.1} parent=11 // pred_region
          _
        $region20: #{deep_fcnn_apply.1} parent=11 // pred_fallthru
          _
        // Predicated region
        $region21: #{deep_fcnn_apply.1} parent=11 // pred_check
          %p214 = pneg %p104
        $region22: #{deep_fcnn_apply.1} parent=11 // pred_check_branch
          %216 = sbr.rel (%p214) target = $region24
        $region23: #{deep_fcnn_apply.1} parent=11 // pred_region
          _
        $region24: #{deep_fcnn_apply.1} parent=11 // pred_fallthru
          _
        // Predicated region
        $region25: #{deep_fcnn_apply.1} parent=11 // pred_check
          %p217 = pneg %p125
        $region26: #{deep_fcnn_apply.1} parent=11 // pred_check_branch
          %219 = sbr.rel (%p217) target = $region28
        $region27: #{deep_fcnn_apply.1} parent=11 // pred_region
          %s221 = ssub.s32 16, 16
          %222 = vsyncadd [#allocation3], %s221
          %s224 = sshll.u32 [#allocation2], 4
          %s225 = int_to_ptr.vmem [resolvable:$true] %s224
          %227 = dma.hbm_to_vmem [thread:$0]  %s4, 16, %s225, [#allocation3]
        $region28: #{deep_fcnn_apply.1} parent=11 // pred_fallthru
          _
        // Predicated region
        $region29: #{deep_fcnn_apply.1} parent=11 // pred_check
          %p228 = pneg %p146
        $region30: #{deep_fcnn_apply.1} parent=11 // pred_check_branch
          %230 = sbr.rel (%p228) target = $region32
        $region31: #{deep_fcnn_apply.1} parent=11 // pred_region
          %s232 = ssub.s32 2048, 2048
          %233 = vsyncadd [#allocation5], %s232
          %s234 = sshll.u32 [#allocation4], 4
          %s235 = int_to_ptr.vmem [resolvable:$true] %s234
          %240 = dma.hbm_to_vmem [thread:$0]  %s5, 2048, %s235, [#allocation5], 128, 128, 8
        $region32: #{deep_fcnn_apply.1} parent=11 // pred_fallthru
          _
        // Predicated region
        $region33: #{deep_fcnn_apply.1} parent=11 // pred_check
          %p241 = pneg %p167
        $region34: #{deep_fcnn_apply.1} parent=11 // pred_check_branch
          %243 = sbr.rel (%p241) target = $region36
        $region35: #{deep_fcnn_apply.1} parent=11 // pred_region
          %s245 = ssub.s32 16, 16
          %246 = vsyncadd [#allocation5], %s245
          %s248 = sshll.u32 [#allocation6], 4
          %s249 = int_to_ptr.vmem [resolvable:$true] %s248
          %251 = dma.hbm_to_vmem [thread:$0]  %s6, 16, %s249, [#allocation5]
        $region36: #{deep_fcnn_apply.1} parent=11 // pred_fallthru
          _
      $region12: #{deep_fcnn_apply.1} parent=5 // pred_fallthru
        _
      %p252 = scmp.lt.s32.totalorder %s15, 2
      // Predicated region
      $region37: #{deep_fcnn_apply.1} parent=5 // pred_check
        %p253 = pneg %p252
      $region38: #{deep_fcnn_apply.1} parent=5 // pred_check_branch
        %255 = sbr.rel (%p253) target = $region40
      $region39: #{deep_fcnn_apply.1} parent=5 // pred_region
        // Predicated region
        $region41: #{deep_fcnn_apply.1} parent=39 // pred_check
          %p256 = pneg %p35
        $region42: #{deep_fcnn_apply.1} parent=39 // pred_check_branch
          %258 = sbr.rel (%p256) target = $region44
        $region43: #{deep_fcnn_apply.1} parent=39 // pred_region
          %p259 = scmp.lt.s32.totalorder %s15, 1
          %s260 = scalar_select %p259, %s15, 1
          %s261 = smul.addr %s260, 8
          %s262 = smul.addr %s261, 8
          %s263 = scalar_lea.vmem %s0, %s262
        $region44: #{deep_fcnn_apply.1} parent=39 // pred_fallthru
          _
      $region40: #{deep_fcnn_apply.1} parent=5 // pred_fallthru
        _
      %p264 = scmp.le.s32.totalorder 1, %s15
      %p265 = scmp.lt.s32.totalorder %s15, 3
      %p266 = pnand %p264, %p265
      %p267 = pneg %p266
      // Predicated region
      $region45: #{deep_fcnn_apply.1} parent=5 // pred_check
        _
      $region46: #{deep_fcnn_apply.1} parent=5 // pred_check_branch
        %269 = sbr.rel (%p266) target = $region48
      $region47: #{deep_fcnn_apply.1} parent=5 // pred_region
        %s270 = ssub.s32 %s15, 1
        // Predicated region
        $region49: #{deep_fcnn_apply.1} parent=47 // pred_check
          %p271 = pneg %p125
        $region50: #{deep_fcnn_apply.1} parent=47 // pred_check_branch
          %273 = sbr.rel (%p271) target = $region52
        $region51: #{deep_fcnn_apply.1} parent=47 // pred_region
          %274 = dma.done [#allocation3], 16
        $region52: #{deep_fcnn_apply.1} parent=47 // pred_fallthru
          _
        // Predicated region
        $region53: #{deep_fcnn_apply.1} parent=47 // pred_check
          %p275 = pneg %p146
        $region54: #{deep_fcnn_apply.1} parent=47 // pred_check_branch
          %277 = sbr.rel (%p275) target = $region56
        $region55: #{deep_fcnn_apply.1} parent=47 // pred_region
          %278 = dma.done [#allocation5], 2048
        $region56: #{deep_fcnn_apply.1} parent=47 // pred_fallthru
          _
        // Predicated region
        $region57: #{deep_fcnn_apply.1} parent=47 // pred_check
          %p279 = pneg %p167
        $region58: #{deep_fcnn_apply.1} parent=47 // pred_check_branch
          %281 = sbr.rel (%p279) target = $region60
        $region59: #{deep_fcnn_apply.1} parent=47 // pred_region
          %282 = dma.done [#allocation5], 16
        $region60: #{deep_fcnn_apply.1} parent=47 // pred_fallthru
          _
        %p283 = scmp.lt.s32.totalorder %s20, 1
        %s284 = scalar_select %p283, %s20, 1
        %s285 = smul.addr %s284, 8
        %s286 = smul.addr %s285, 8
        %s287 = scalar_lea.vmem %s0, %s286
        %p288 = pneg %p41
        %p289 = pneg %p38
        %p290 = pneg %p62
        %p291 = pneg %p59
        %p292 = pneg %p83
        %p293 = pneg %p80
        %p294 = pneg %p104
        %p295 = pneg %p101
        %p296 = pneg %p125
        %p297 = pneg %p122
        %p298 = pneg %p146
        %p299 = pneg %p143
        %p300 = pneg %p167
        %p301 = pneg %p164
        %p302 = pneg %p193
        %p303 = pneg %p190
        %p304 = scmp.lt.s32.totalorder %s20, 1
        %s305 = scalar_select %p304, %s20, 1
        %s306 = smul.addr %s305, 8
        %s307 = scalar_lea.vmem %s7, %s306
        %p308 = scmp.lt.s32.totalorder %s20, 1
        %s309 = scalar_select %p308, %s20, 1
        %s310 = smul.addr %s309, 8
        %s311 = smul.addr %s310, 8
        %s312 = scalar_lea.vmem %s0, %s311
        %p313 = scmp.lt.s32.totalorder %s20, 1
        %s314 = scalar_select %p313, %s20, 1
        %s315 = smul.addr %s314, 8
        %s316 = scalar_lea.vmem %s7, %s315
        %v317 = vld [vmem:[%s312] sm:$0xff]
        %v318 = vld [vmem:[%s312 + $0x8] sm:$0xff]
        %v319 = vld [vmem:[%s312 + $0x10] sm:$0xff]
        %v320 = vld [vmem:[%s312 + $0x18] sm:$0xff]
        %v321 = vld [vmem:[%s312 + $0x20] sm:$0xff]
        %v322 = vld [vmem:[%s312 + $0x28] sm:$0xff]
        %v323 = vld [vmem:[%s312 + $0x30] sm:$0xff]
        %v324 = vld [vmem:[%s312 + $0x38] sm:$0xff]
        %v325 = vld [vmem:[%s1] sm:$0xff]
        %v326 = vld [vmem:[%s1 + $0x8] sm:$0xff]
        %v327 = vld [vmem:[%s1 + $0x10] sm:$0xff]
        %v328 = vld [vmem:[%s1 + $0x18] sm:$0xff]
        %v329 = vld [vmem:[%s1 + $0x20] sm:$0xff]
        %v330 = vld [vmem:[%s1 + $0x28] sm:$0xff]
        %v331 = vld [vmem:[%s1 + $0x30] sm:$0xff]
        %v332 = vld [vmem:[%s1 + $0x38] sm:$0xff]
        %v333 = vld [vmem:[%s1 + $0x40] sm:$0xff]
        %v334 = vld [vmem:[%s1 + $0x48] sm:$0xff]
        %v335 = vld [vmem:[%s1 + $0x50] sm:$0xff]
        %v336 = vld [vmem:[%s1 + $0x58] sm:$0xff]
        %v337 = vld [vmem:[%s1 + $0x60] sm:$0xff]
        %v338 = vld [vmem:[%s1 + $0x68] sm:$0xff]
        %v339 = vld [vmem:[%s1 + $0x70] sm:$0xff]
        %v340 = vld [vmem:[%s1 + $0x78] sm:$0xff]
        %v341 = vld [vmem:[%s1 + $0x80] sm:$0xff]
        %v342 = vld [vmem:[%s1 + $0x88] sm:$0xff]
        %v343 = vld [vmem:[%s1 + $0x90] sm:$0xff]
        %v344 = vld [vmem:[%s1 + $0x98] sm:$0xff]
        %v345 = vld [vmem:[%s1 + $0xa0] sm:$0xff]
        %v346 = vld [vmem:[%s1 + $0xa8] sm:$0xff]
        %v347 = vld [vmem:[%s1 + $0xb0] sm:$0xff]
        %v348 = vld [vmem:[%s1 + $0xb8] sm:$0xff]
        %v349 = vld [vmem:[%s1 + $0xc0] sm:$0xff]
        %v350 = vld [vmem:[%s1 + $0xc8] sm:$0xff]
        %v351 = vld [vmem:[%s1 + $0xd0] sm:$0xff]
        %v352 = vld [vmem:[%s1 + $0xd8] sm:$0xff]
        %v353 = vld [vmem:[%s1 + $0xe0] sm:$0xff]
        %v354 = vld [vmem:[%s1 + $0xe8] sm:$0xff]
        %v355 = vld [vmem:[%s1 + $0xf0] sm:$0xff]
        %v356 = vld [vmem:[%s1 + $0xf8] sm:$0xff]
        %v357 = vld [vmem:[%s1 + $0x100] sm:$0xff]
        %v358 = vld [vmem:[%s1 + $0x108] sm:$0xff]
        %v359 = vld [vmem:[%s1 + $0x110] sm:$0xff]
        %v360 = vld [vmem:[%s1 + $0x118] sm:$0xff]
        %v361 = vld [vmem:[%s1 + $0x120] sm:$0xff]
        %v362 = vld [vmem:[%s1 + $0x128] sm:$0xff]
        %v363 = vld [vmem:[%s1 + $0x130] sm:$0xff]
        %v364 = vld [vmem:[%s1 + $0x138] sm:$0xff]
        %v365 = vld [vmem:[%s1 + $0x140] sm:$0xff]
        %v366 = vld [vmem:[%s1 + $0x148] sm:$0xff]
        %v367 = vld [vmem:[%s1 + $0x150] sm:$0xff]
        %v368 = vld [vmem:[%s1 + $0x158] sm:$0xff]
        %v369 = vld [vmem:[%s1 + $0x160] sm:$0xff]
        %v370 = vld [vmem:[%s1 + $0x168] sm:$0xff]
        %v371 = vld [vmem:[%s1 + $0x170] sm:$0xff]
        %v372 = vld [vmem:[%s1 + $0x178] sm:$0xff]
        %v373 = vld [vmem:[%s1 + $0x180] sm:$0xff]
        %v374 = vld [vmem:[%s1 + $0x188] sm:$0xff]
        %v375 = vld [vmem:[%s1 + $0x190] sm:$0xff]
        %v376 = vld [vmem:[%s1 + $0x198] sm:$0xff]
        %v377 = vld [vmem:[%s1 + $0x1a0] sm:$0xff]
        %v378 = vld [vmem:[%s1 + $0x1a8] sm:$0xff]
        %v379 = vld [vmem:[%s1 + $0x1b0] sm:$0xff]
        %v380 = vld [vmem:[%s1 + $0x1b8] sm:$0xff]
        %v381 = vld [vmem:[%s1 + $0x1c0] sm:$0xff]
        %v382 = vld [vmem:[%s1 + $0x1c8] sm:$0xff]
        %v383 = vld [vmem:[%s1 + $0x1d0] sm:$0xff]
        %v384 = vld [vmem:[%s1 + $0x1d8] sm:$0xff]
        %v385 = vld [vmem:[%s1 + $0x1e0] sm:$0xff]
        %v386 = vld [vmem:[%s1 + $0x1e8] sm:$0xff]
        %v387 = vld [vmem:[%s1 + $0x1f0] sm:$0xff]
        %v388 = vld [vmem:[%s1 + $0x1f8] sm:$0xff]
        %v389 = vld [vmem:[%s1 + $0x200] sm:$0xff]
        %v390 = vld [vmem:[%s1 + $0x208] sm:$0xff]
        %v391 = vld [vmem:[%s1 + $0x210] sm:$0xff]
        %v392 = vld [vmem:[%s1 + $0x218] sm:$0xff]
        %v393 = vld [vmem:[%s1 + $0x220] sm:$0xff]
        %v394 = vld [vmem:[%s1 + $0x228] sm:$0xff]
        %v395 = vld [vmem:[%s1 + $0x230] sm:$0xff]
        %v396 = vld [vmem:[%s1 + $0x238] sm:$0xff]
        %v397 = vld [vmem:[%s1 + $0x240] sm:$0xff]
        %v398 = vld [vmem:[%s1 + $0x248] sm:$0xff]
        %v399 = vld [vmem:[%s1 + $0x250] sm:$0xff]
        %v400 = vld [vmem:[%s1 + $0x258] sm:$0xff]
        %v401 = vld [vmem:[%s1 + $0x260] sm:$0xff]
        %v402 = vld [vmem:[%s1 + $0x268] sm:$0xff]
        %v403 = vld [vmem:[%s1 + $0x270] sm:$0xff]
        %v404 = vld [vmem:[%s1 + $0x278] sm:$0xff]
        %v405 = vld [vmem:[%s1 + $0x280] sm:$0xff]
        %v406 = vld [vmem:[%s1 + $0x288] sm:$0xff]
        %v407 = vld [vmem:[%s1 + $0x290] sm:$0xff]
        %v408 = vld [vmem:[%s1 + $0x298] sm:$0xff]
        %v409 = vld [vmem:[%s1 + $0x2a0] sm:$0xff]
        %v410 = vld [vmem:[%s1 + $0x2a8] sm:$0xff]
        %v411 = vld [vmem:[%s1 + $0x2b0] sm:$0xff]
        %v412 = vld [vmem:[%s1 + $0x2b8] sm:$0xff]
        %v413 = vld [vmem:[%s1 + $0x2c0] sm:$0xff]
        %v414 = vld [vmem:[%s1 + $0x2c8] sm:$0xff]
        %v415 = vld [vmem:[%s1 + $0x2d0] sm:$0xff]
        %v416 = vld [vmem:[%s1 + $0x2d8] sm:$0xff]
        %v417 = vld [vmem:[%s1 + $0x2e0] sm:$0xff]
        %v418 = vld [vmem:[%s1 + $0x2e8] sm:$0xff]
        %v419 = vld [vmem:[%s1 + $0x2f0] sm:$0xff]
        %v420 = vld [vmem:[%s1 + $0x2f8] sm:$0xff]
        %v421 = vld [vmem:[%s1 + $0x300] sm:$0xff]
        %v422 = vld [vmem:[%s1 + $0x308] sm:$0xff]
        %v423 = vld [vmem:[%s1 + $0x310] sm:$0xff]
        %v424 = vld [vmem:[%s1 + $0x318] sm:$0xff]
        %v425 = vld [vmem:[%s1 + $0x320] sm:$0xff]
        %v426 = vld [vmem:[%s1 + $0x328] sm:$0xff]
        %v427 = vld [vmem:[%s1 + $0x330] sm:$0xff]
        %v428 = vld [vmem:[%s1 + $0x338] sm:$0xff]
        %v429 = vld [vmem:[%s1 + $0x340] sm:$0xff]
        %v430 = vld [vmem:[%s1 + $0x348] sm:$0xff]
        %v431 = vld [vmem:[%s1 + $0x350] sm:$0xff]
        %v432 = vld [vmem:[%s1 + $0x358] sm:$0xff]
        %v433 = vld [vmem:[%s1 + $0x360] sm:$0xff]
        %v434 = vld [vmem:[%s1 + $0x368] sm:$0xff]
        %v435 = vld [vmem:[%s1 + $0x370] sm:$0xff]
        %v436 = vld [vmem:[%s1 + $0x378] sm:$0xff]
        %v437 = vld [vmem:[%s1 + $0x380] sm:$0xff]
        %v438 = vld [vmem:[%s1 + $0x388] sm:$0xff]
        %v439 = vld [vmem:[%s1 + $0x390] sm:$0xff]
        %v440 = vld [vmem:[%s1 + $0x398] sm:$0xff]
        %v441 = vld [vmem:[%s1 + $0x3a0] sm:$0xff]
        %v442 = vld [vmem:[%s1 + $0x3a8] sm:$0xff]
        %v443 = vld [vmem:[%s1 + $0x3b0] sm:$0xff]
        %v444 = vld [vmem:[%s1 + $0x3b8] sm:$0xff]
        %v445 = vld [vmem:[%s1 + $0x3c0] sm:$0xff]
        %v446 = vld [vmem:[%s1 + $0x3c8] sm:$0xff]
        %v447 = vld [vmem:[%s1 + $0x3d0] sm:$0xff]
        %v448 = vld [vmem:[%s1 + $0x3d8] sm:$0xff]
        %v449 = vld [vmem:[%s1 + $0x3e0] sm:$0xff]
        %v450 = vld [vmem:[%s1 + $0x3e8] sm:$0xff]
        %v451 = vld [vmem:[%s1 + $0x3f0] sm:$0xff]
        %v452 = vld [vmem:[%s1 + $0x3f8] sm:$0xff]
        %v453 = vld [vmem:[%s2] sm:$0x1]
        %v455 = vlaneseq
        %v456 = vshrl.u32 %v455, 7
        %v457 = vsub.s32 0, %v456
        %v458 = vrot.slane %v453, %v457
        %460 = vmatprep.subr.mxu0 0.0
        %461 = vmatpush1.msra.mxu0 %v340
        %462 = vmatprep.subr.mxu0 0.0
        %463 = vmatpush1.msra.mxu0 %v339
        %464 = vmatprep.subr.mxu0 0.0
        %465 = vmatpush1.msra.mxu0 %v338
        %466 = vmatprep.subr.mxu0 0.0
        %467 = vmatpush1.msra.mxu0 %v337
        %468 = vmatprep.subr.mxu0 0.0
        %469 = vmatpush1.msra.mxu0 %v336
        %470 = vmatprep.subr.mxu0 0.0
        %471 = vmatpush1.msra.mxu0 %v335
        %472 = vmatprep.subr.mxu0 0.0
        %473 = vmatpush1.msra.mxu0 %v334
        %474 = vmatprep.subr.mxu0 0.0
        %475 = vmatpush1.msra.mxu0 %v333
        %476 = vmatprep.subr.mxu0 0.0
        %477 = vmatpush1.msra.mxu0 %v332
        %478 = vmatprep.subr.mxu0 0.0
        %479 = vmatpush1.msra.mxu0 %v331
        %480 = vmatprep.subr.mxu0 0.0
        %481 = vmatpush1.msra.mxu0 %v330
        %482 = vmatprep.subr.mxu0 0.0
        %483 = vmatpush1.msra.mxu0 %v329
        %484 = vmatprep.subr.mxu0 0.0
        %485 = vmatpush1.msra.mxu0 %v328
        %486 = vmatprep.subr.mxu0 0.0
        %487 = vmatpush1.msra.mxu0 %v327
        %488 = vmatprep.subr.mxu0 0.0
        %489 = vmatpush1.msra.mxu0 %v326
        %490 = vmatprep.subr.mxu0 0.0
        %491 = vmatpush1.msra.mxu0 %v325
        %492 = vmatprep.subr.mxu0 0.0
        %493 = vmatpush2.msra.mxu0 %v356
        %494 = vmatprep.subr.mxu0 0.0
        %495 = vmatpush2.msra.mxu0 %v355
        %496 = vmatprep.subr.mxu0 0.0
        %497 = vmatpush2.msra.mxu0 %v354
        %498 = vmatprep.subr.mxu0 0.0
        %499 = vmatpush2.msra.mxu0 %v353
        %500 = vmatprep.subr.mxu0 0.0
        %501 = vmatpush2.msra.mxu0 %v352
        %502 = vmatprep.subr.mxu0 0.0
        %503 = vmatpush2.msra.mxu0 %v351
        %504 = vmatprep.subr.mxu0 0.0
        %505 = vmatpush2.msra.mxu0 %v350
        %506 = vmatprep.subr.mxu0 0.0
        %507 = vmatpush2.msra.mxu0 %v349
        %508 = vmatprep.subr.mxu0 0.0
        %509 = vmatpush2.msra.mxu0 %v348
        %510 = vmatprep.subr.mxu0 0.0
        %511 = vmatpush2.msra.mxu0 %v347
        %512 = vmatprep.subr.mxu0 0.0
        %513 = vmatpush2.msra.mxu0 %v346
        %514 = vmatprep.subr.mxu0 0.0
        %515 = vmatpush2.msra.mxu0 %v345
        %516 = vmatprep.subr.mxu0 0.0
        %517 = vmatpush2.msra.mxu0 %v344
        %518 = vmatprep.subr.mxu0 0.0
        %519 = vmatpush2.msra.mxu0 %v343
        %520 = vmatprep.subr.mxu0 0.0
        %521 = vmatpush2.msra.mxu0 %v342
        %522 = vmatprep.subr.mxu0 0.0
        %523 = vmatpush2.msra.mxu0 %v341
        %524 = vmatprep.mubr.f32.mxu0 %v318
        %525 = vmatmul.mubr.f32.gmra.mxu0 %v317
        %v526 = vpop.f32.mrf.mxu0
        %v527 = vadd.f32 %v458, %v526
        %v528 = vpop.f32.mrf.mxu0
        %529 = vdwg.mxu0
        %530 = vmatprep.subr.mxu0 0.0
        %531 = vmatpush1.msra.mxu0 %v372
        %532 = vmatprep.subr.mxu0 0.0
        %533 = vmatpush1.msra.mxu0 %v371
        %534 = vmatprep.subr.mxu0 0.0
        %535 = vmatpush1.msra.mxu0 %v370
        %536 = vmatprep.subr.mxu0 0.0
        %537 = vmatpush1.msra.mxu0 %v369
        %538 = vmatprep.subr.mxu0 0.0
        %539 = vmatpush1.msra.mxu0 %v368
        %540 = vmatprep.subr.mxu0 0.0
        %541 = vmatpush1.msra.mxu0 %v367
        %542 = vmatprep.subr.mxu0 0.0
        %543 = vmatpush1.msra.mxu0 %v366
        %544 = vmatprep.subr.mxu0 0.0
        %545 = vmatpush1.msra.mxu0 %v365
        %546 = vmatprep.subr.mxu0 0.0
        %547 = vmatpush1.msra.mxu0 %v364
        %548 = vmatprep.subr.mxu0 0.0
        %549 = vmatpush1.msra.mxu0 %v363
        %550 = vmatprep.subr.mxu0 0.0
        %551 = vmatpush1.msra.mxu0 %v362
        %552 = vmatprep.subr.mxu0 0.0
        %553 = vmatpush1.msra.mxu0 %v361
        %554 = vmatprep.subr.mxu0 0.0
        %555 = vmatpush1.msra.mxu0 %v360
        %556 = vmatprep.subr.mxu0 0.0
        %557 = vmatpush1.msra.mxu0 %v359
        %558 = vmatprep.subr.mxu0 0.0
        %559 = vmatpush1.msra.mxu0 %v358
        %560 = vmatprep.subr.mxu0 0.0
        %561 = vmatpush1.msra.mxu0 %v357
        %562 = vmatprep.subr.mxu0 0.0
        %563 = vmatpush2.msra.mxu0 %v388
        %564 = vmatprep.subr.mxu0 0.0
        %565 = vmatpush2.msra.mxu0 %v387
        %566 = vmatprep.subr.mxu0 0.0
        %567 = vmatpush2.msra.mxu0 %v386
        %568 = vmatprep.subr.mxu0 0.0
        %569 = vmatpush2.msra.mxu0 %v385
        %570 = vmatprep.subr.mxu0 0.0
        %571 = vmatpush2.msra.mxu0 %v384
        %572 = vmatprep.subr.mxu0 0.0
        %573 = vmatpush2.msra.mxu0 %v383
        %574 = vmatprep.subr.mxu0 0.0
        %575 = vmatpush2.msra.mxu0 %v382
        %576 = vmatprep.subr.mxu0 0.0
        %577 = vmatpush2.msra.mxu0 %v381
        %578 = vmatprep.subr.mxu0 0.0
        %579 = vmatpush2.msra.mxu0 %v380
        %580 = vmatprep.subr.mxu0 0.0
        %581 = vmatpush2.msra.mxu0 %v379
        %582 = vmatprep.subr.mxu0 0.0
        %583 = vmatpush2.msra.mxu0 %v378
        %584 = vmatprep.subr.mxu0 0.0
        %585 = vmatpush2.msra.mxu0 %v377
        %586 = vmatprep.subr.mxu0 0.0
        %587 = vmatpush2.msra.mxu0 %v376
        %588 = vmatprep.subr.mxu0 0.0
        %589 = vmatpush2.msra.mxu0 %v375
        %590 = vmatprep.subr.mxu0 0.0
        %591 = vmatpush2.msra.mxu0 %v374
        %592 = vmatprep.subr.mxu0 0.0
        %593 = vmatpush2.msra.mxu0 %v373
        %594 = vmatprep.mubr.f32.mxu0 %v320
        %595 = vmatmul.mubr.f32.gmra.mxu0 %v319
        %v596 = vpop.f32.mrf.mxu0
        %v597 = vadd.f32 %v527, %v596
        %v598 = vpop.f32.mrf.mxu0
        %599 = vdwg.mxu0
        %600 = vmatprep.subr.mxu0 0.0
        %601 = vmatpush1.msra.mxu0 %v404
        %602 = vmatprep.subr.mxu0 0.0
        %603 = vmatpush1.msra.mxu0 %v403
        %604 = vmatprep.subr.mxu0 0.0
        %605 = vmatpush1.msra.mxu0 %v402
        %606 = vmatprep.subr.mxu0 0.0
        %607 = vmatpush1.msra.mxu0 %v401
        %608 = vmatprep.subr.mxu0 0.0
        %609 = vmatpush1.msra.mxu0 %v400
        %610 = vmatprep.subr.mxu0 0.0
        %611 = vmatpush1.msra.mxu0 %v399
        %612 = vmatprep.subr.mxu0 0.0
        %613 = vmatpush1.msra.mxu0 %v398
        %614 = vmatprep.subr.mxu0 0.0
        %615 = vmatpush1.msra.mxu0 %v397
        %616 = vmatprep.subr.mxu0 0.0
        %617 = vmatpush1.msra.mxu0 %v396
        %618 = vmatprep.subr.mxu0 0.0
        %619 = vmatpush1.msra.mxu0 %v395
        %620 = vmatprep.subr.mxu0 0.0
        %621 = vmatpush1.msra.mxu0 %v394
        %622 = vmatprep.subr.mxu0 0.0
        %623 = vmatpush1.msra.mxu0 %v393
        %624 = vmatprep.subr.mxu0 0.0
        %625 = vmatpush1.msra.mxu0 %v392
        %626 = vmatprep.subr.mxu0 0.0
        %627 = vmatpush1.msra.mxu0 %v391
        %628 = vmatprep.subr.mxu0 0.0
        %629 = vmatpush1.msra.mxu0 %v390
        %630 = vmatprep.subr.mxu0 0.0
        %631 = vmatpush1.msra.mxu0 %v389
        %632 = vmatprep.subr.mxu0 0.0
        %633 = vmatpush2.msra.mxu0 %v420
        %634 = vmatprep.subr.mxu0 0.0
        %635 = vmatpush2.msra.mxu0 %v419
        %636 = vmatprep.subr.mxu0 0.0
        %637 = vmatpush2.msra.mxu0 %v418
        %638 = vmatprep.subr.mxu0 0.0
        %639 = vmatpush2.msra.mxu0 %v417
        %640 = vmatprep.subr.mxu0 0.0
        %641 = vmatpush2.msra.mxu0 %v416
        %642 = vmatprep.subr.mxu0 0.0
        %643 = vmatpush2.msra.mxu0 %v415
        %644 = vmatprep.subr.mxu0 0.0
        %645 = vmatpush2.msra.mxu0 %v414
        %646 = vmatprep.subr.mxu0 0.0
        %647 = vmatpush2.msra.mxu0 %v413
        %648 = vmatprep.subr.mxu0 0.0
        %649 = vmatpush2.msra.mxu0 %v412
        %650 = vmatprep.subr.mxu0 0.0
        %651 = vmatpush2.msra.mxu0 %v411
        %652 = vmatprep.subr.mxu0 0.0
        %653 = vmatpush2.msra.mxu0 %v410
        %654 = vmatprep.subr.mxu0 0.0
        %655 = vmatpush2.msra.mxu0 %v409
        %656 = vmatprep.subr.mxu0 0.0
        %657 = vmatpush2.msra.mxu0 %v408
        %658 = vmatprep.subr.mxu0 0.0
        %659 = vmatpush2.msra.mxu0 %v407
        %660 = vmatprep.subr.mxu0 0.0
        %661 = vmatpush2.msra.mxu0 %v406
        %662 = vmatprep.subr.mxu0 0.0
        %663 = vmatpush2.msra.mxu0 %v405
        %664 = vmatprep.mubr.f32.mxu0 %v322
        %665 = vmatmul.mubr.f32.gmra.mxu0 %v321
        %v666 = vpop.f32.mrf.mxu0
        %v667 = vadd.f32 %v597, %v666
        %v668 = vpop.f32.mrf.mxu0
        %669 = vdwg.mxu0
        %670 = vmatprep.subr.mxu0 0.0
        %671 = vmatpush1.msra.mxu0 %v436
        %672 = vmatprep.subr.mxu0 0.0
        %673 = vmatpush1.msra.mxu0 %v435
        %674 = vmatprep.subr.mxu0 0.0
        %675 = vmatpush1.msra.mxu0 %v434
        %676 = vmatprep.subr.mxu0 0.0
        %677 = vmatpush1.msra.mxu0 %v433
        %678 = vmatprep.subr.mxu0 0.0
        %679 = vmatpush1.msra.mxu0 %v432
        %680 = vmatprep.subr.mxu0 0.0
        %681 = vmatpush1.msra.mxu0 %v431
        %682 = vmatprep.subr.mxu0 0.0
        %683 = vmatpush1.msra.mxu0 %v430
        %684 = vmatprep.subr.mxu0 0.0
        %685 = vmatpush1.msra.mxu0 %v429
        %686 = vmatprep.subr.mxu0 0.0
        %687 = vmatpush1.msra.mxu0 %v428
        %688 = vmatprep.subr.mxu0 0.0
        %689 = vmatpush1.msra.mxu0 %v427
        %690 = vmatprep.subr.mxu0 0.0
        %691 = vmatpush1.msra.mxu0 %v426
        %692 = vmatprep.subr.mxu0 0.0
        %693 = vmatpush1.msra.mxu0 %v425
        %694 = vmatprep.subr.mxu0 0.0
        %695 = vmatpush1.msra.mxu0 %v424
        %696 = vmatprep.subr.mxu0 0.0
        %697 = vmatpush1.msra.mxu0 %v423
        %698 = vmatprep.subr.mxu0 0.0
        %699 = vmatpush1.msra.mxu0 %v422
        %700 = vmatprep.subr.mxu0 0.0
        %701 = vmatpush1.msra.mxu0 %v421
        %702 = vmatprep.subr.mxu0 0.0
        %703 = vmatpush2.msra.mxu0 %v452
        %704 = vmatprep.subr.mxu0 0.0
        %705 = vmatpush2.msra.mxu0 %v451
        %706 = vmatprep.subr.mxu0 0.0
        %707 = vmatpush2.msra.mxu0 %v450
        %708 = vmatprep.subr.mxu0 0.0
        %709 = vmatpush2.msra.mxu0 %v449
        %710 = vmatprep.subr.mxu0 0.0
        %711 = vmatpush2.msra.mxu0 %v448
        %712 = vmatprep.subr.mxu0 0.0
        %713 = vmatpush2.msra.mxu0 %v447
        %714 = vmatprep.subr.mxu0 0.0
        %715 = vmatpush2.msra.mxu0 %v446
        %716 = vmatprep.subr.mxu0 0.0
        %717 = vmatpush2.msra.mxu0 %v445
        %718 = vmatprep.subr.mxu0 0.0
        %719 = vmatpush2.msra.mxu0 %v444
        %720 = vmatprep.subr.mxu0 0.0
        %721 = vmatpush2.msra.mxu0 %v443
        %722 = vmatprep.subr.mxu0 0.0
        %723 = vmatpush2.msra.mxu0 %v442
        %724 = vmatprep.subr.mxu0 0.0
        %725 = vmatpush2.msra.mxu0 %v441
        %726 = vmatprep.subr.mxu0 0.0
        %727 = vmatpush2.msra.mxu0 %v440
        %728 = vmatprep.subr.mxu0 0.0
        %729 = vmatpush2.msra.mxu0 %v439
        %730 = vmatprep.subr.mxu0 0.0
        %731 = vmatpush2.msra.mxu0 %v438
        %732 = vmatprep.subr.mxu0 0.0
        %733 = vmatpush2.msra.mxu0 %v437
        %734 = vmatprep.mubr.f32.mxu0 %v324
        %735 = vmatmul.mubr.f32.gmra.mxu0 %v323
        %v736 = vpop.f32.mrf.mxu0
        %v737 = vadd.f32 %v667, %v736
        %v738 = vpop.f32.mrf.mxu0
        %739 = vdwg.mxu0
        %v740 = vmax.f32 %v737, 0.0
        %v741 = vld [vmem:[%s3] sm:$0xff]
        %v742 = vld [vmem:[%s3 + $0x8] sm:$0xff]
        %v743 = vld [vmem:[%s3 + $0x10] sm:$0xff]
        %v744 = vld [vmem:[%s3 + $0x18] sm:$0xff]
        %v745 = vld [vmem:[%s3 + $0x20] sm:$0xff]
        %v746 = vld [vmem:[%s3 + $0x28] sm:$0xff]
        %v747 = vld [vmem:[%s3 + $0x30] sm:$0xff]
        %v748 = vld [vmem:[%s3 + $0x38] sm:$0xff]
        %v749 = vld [vmem:[%s3 + $0x40] sm:$0xff]
        %v750 = vld [vmem:[%s3 + $0x48] sm:$0xff]
        %v751 = vld [vmem:[%s3 + $0x50] sm:$0xff]
        %v752 = vld [vmem:[%s3 + $0x58] sm:$0xff]
        %v753 = vld [vmem:[%s3 + $0x60] sm:$0xff]
        %v754 = vld [vmem:[%s3 + $0x68] sm:$0xff]
        %v755 = vld [vmem:[%s3 + $0x70] sm:$0xff]
        %v756 = vld [vmem:[%s3 + $0x78] sm:$0xff]
        %v757 = vld [vmem:[#allocation2] sm:$0x1]
        %v759 = vlaneseq
        %v760 = vshrl.u32 %v759, 7
        %v761 = vsub.s32 0, %v760
        %v762 = vrot.slane %v757, %v761
        %764 = vmatprep.subr.mxu0 0.0
        %765 = vmatpush1.msra.mxu0 %v756
        %766 = vmatprep.subr.mxu0 0.0
        %767 = vmatpush1.msra.mxu0 %v755
        %768 = vmatprep.subr.mxu0 0.0
        %769 = vmatpush1.msra.mxu0 %v754
        %770 = vmatprep.subr.mxu0 0.0
        %771 = vmatpush1.msra.mxu0 %v753
        %772 = vmatprep.subr.mxu0 0.0
        %773 = vmatpush1.msra.mxu0 %v752
        %774 = vmatprep.subr.mxu0 0.0
        %775 = vmatpush1.msra.mxu0 %v751
        %776 = vmatprep.subr.mxu0 0.0
        %777 = vmatpush1.msra.mxu0 %v750
        %778 = vmatprep.subr.mxu0 0.0
        %779 = vmatpush1.msra.mxu0 %v749
        %780 = vmatprep.subr.mxu0 0.0
        %781 = vmatpush1.msra.mxu0 %v748
        %782 = vmatprep.subr.mxu0 0.0
        %783 = vmatpush1.msra.mxu0 %v747
        %784 = vmatprep.subr.mxu0 0.0
        %785 = vmatpush1.msra.mxu0 %v746
        %786 = vmatprep.subr.mxu0 0.0
        %787 = vmatpush1.msra.mxu0 %v745
        %788 = vmatprep.subr.mxu0 0.0
        %789 = vmatpush1.msra.mxu0 %v744
        %790 = vmatprep.subr.mxu0 0.0
        %791 = vmatpush1.msra.mxu0 %v743
        %792 = vmatprep.subr.mxu0 0.0
        %793 = vmatpush1.msra.mxu0 %v742
        %794 = vmatprep.subr.mxu0 0.0
        %795 = vmatpush1.msra.mxu0 %v741
        %796 = vmatprep.subr.mxu0 0.0
        %797 = vmatpush2.msra.mxu0 0.0
        %798 = vmatprep.subr.mxu0 0.0
        %799 = vmatpush2.msra.mxu0 0.0
        %800 = vmatprep.subr.mxu0 0.0
        %801 = vmatpush2.msra.mxu0 0.0
        %802 = vmatprep.subr.mxu0 0.0
        %803 = vmatpush2.msra.mxu0 0.0
        %804 = vmatprep.subr.mxu0 0.0
        %805 = vmatpush2.msra.mxu0 0.0
        %806 = vmatprep.subr.mxu0 0.0
        %807 = vmatpush2.msra.mxu0 0.0
        %808 = vmatprep.subr.mxu0 0.0
        %809 = vmatpush2.msra.mxu0 0.0
        %810 = vmatprep.subr.mxu0 0.0
        %811 = vmatpush2.msra.mxu0 0.0
        %812 = vmatprep.subr.mxu0 0.0
        %813 = vmatpush2.msra.mxu0 0.0
        %814 = vmatprep.subr.mxu0 0.0
        %815 = vmatpush2.msra.mxu0 0.0
        %816 = vmatprep.subr.mxu0 0.0
        %817 = vmatpush2.msra.mxu0 0.0
        %818 = vmatprep.subr.mxu0 0.0
        %819 = vmatpush2.msra.mxu0 0.0
        %820 = vmatprep.subr.mxu0 0.0
        %821 = vmatpush2.msra.mxu0 0.0
        %822 = vmatprep.subr.mxu0 0.0
        %823 = vmatpush2.msra.mxu0 0.0
        %824 = vmatprep.subr.mxu0 0.0
        %825 = vmatpush2.msra.mxu0 0.0
        %826 = vmatprep.subr.mxu0 0.0
        %827 = vmatpush2.msra.mxu0 0.0
        %828 = vmatprep.mubr.f32.mxu0 0.0
        %829 = vmatmul.mubr.f32.gmra.mxu0 %v740
        %v830 = vpop.f32.mrf.mxu0
        %v831 = vadd.f32 %v762, %v830
        %v832 = vpop.f32.mrf.mxu0
        %833 = vdwg.mxu0
        %v834 = vmax.f32 %v831, 0.0
        %v835 = vld [vmem:[#allocation4] sm:$0xff]
        %v836 = vld [vmem:[#allocation4 + $0x8] sm:$0xff]
        %v837 = vld [vmem:[#allocation4 + $0x10] sm:$0xff]
        %v838 = vld [vmem:[#allocation4 + $0x18] sm:$0xff]
        %v839 = vld [vmem:[#allocation4 + $0x20] sm:$0xff]
        %v840 = vld [vmem:[#allocation4 + $0x28] sm:$0xff]
        %v841 = vld [vmem:[#allocation4 + $0x30] sm:$0xff]
        %v842 = vld [vmem:[#allocation4 + $0x38] sm:$0xff]
        %v843 = vld [vmem:[#allocation4 + $0x40] sm:$0xff]
        %v844 = vld [vmem:[#allocation4 + $0x48] sm:$0xff]
        %v845 = vld [vmem:[#allocation4 + $0x50] sm:$0xff]
        %v846 = vld [vmem:[#allocation4 + $0x58] sm:$0xff]
        %v847 = vld [vmem:[#allocation4 + $0x60] sm:$0xff]
        %v848 = vld [vmem:[#allocation4 + $0x68] sm:$0xff]
        %v849 = vld [vmem:[#allocation4 + $0x70] sm:$0xff]
        %v850 = vld [vmem:[#allocation4 + $0x78] sm:$0xff]
        %v851 = vld [vmem:[#allocation6] sm:$0x1]
        %v853 = vlaneseq
        %v854 = vshrl.u32 %v853, 7
        %v855 = vsub.s32 0, %v854
        %v856 = vrot.slane %v851, %v855
        %858 = vmatprep.subr.mxu0 0.0
        %859 = vmatpush1.msra.mxu0 %v850
        %860 = vmatprep.subr.mxu0 0.0
        %861 = vmatpush1.msra.mxu0 %v849
        %862 = vmatprep.subr.mxu0 0.0
        %863 = vmatpush1.msra.mxu0 %v848
        %864 = vmatprep.subr.mxu0 0.0
        %865 = vmatpush1.msra.mxu0 %v847
        %866 = vmatprep.subr.mxu0 0.0
        %867 = vmatpush1.msra.mxu0 %v846
        %868 = vmatprep.subr.mxu0 0.0
        %869 = vmatpush1.msra.mxu0 %v845
        %870 = vmatprep.subr.mxu0 0.0
        %871 = vmatpush1.msra.mxu0 %v844
        %872 = vmatprep.subr.mxu0 0.0
        %873 = vmatpush1.msra.mxu0 %v843
        %874 = vmatprep.subr.mxu0 0.0
        %875 = vmatpush1.msra.mxu0 %v842
        %876 = vmatprep.subr.mxu0 0.0
        %877 = vmatpush1.msra.mxu0 %v841
        %878 = vmatprep.subr.mxu0 0.0
        %879 = vmatpush1.msra.mxu0 %v840
        %880 = vmatprep.subr.mxu0 0.0
        %881 = vmatpush1.msra.mxu0 %v839
        %882 = vmatprep.subr.mxu0 0.0
        %883 = vmatpush1.msra.mxu0 %v838
        %884 = vmatprep.subr.mxu0 0.0
        %885 = vmatpush1.msra.mxu0 %v837
        %886 = vmatprep.subr.mxu0 0.0
        %887 = vmatpush1.msra.mxu0 %v836
        %888 = vmatprep.subr.mxu0 0.0
        %889 = vmatpush1.msra.mxu0 %v835
        %890 = vmatprep.subr.mxu0 0.0
        %891 = vmatpush2.msra.mxu0 0.0
        %892 = vmatprep.subr.mxu0 0.0
        %893 = vmatpush2.msra.mxu0 0.0
        %894 = vmatprep.subr.mxu0 0.0
        %895 = vmatpush2.msra.mxu0 0.0
        %896 = vmatprep.subr.mxu0 0.0
        %897 = vmatpush2.msra.mxu0 0.0
        %898 = vmatprep.subr.mxu0 0.0
        %899 = vmatpush2.msra.mxu0 0.0
        %900 = vmatprep.subr.mxu0 0.0
        %901 = vmatpush2.msra.mxu0 0.0
        %902 = vmatprep.subr.mxu0 0.0
        %903 = vmatpush2.msra.mxu0 0.0
        %904 = vmatprep.subr.mxu0 0.0
        %905 = vmatpush2.msra.mxu0 0.0
        %906 = vmatprep.subr.mxu0 0.0
        %907 = vmatpush2.msra.mxu0 0.0
        %908 = vmatprep.subr.mxu0 0.0
        %909 = vmatpush2.msra.mxu0 0.0
        %910 = vmatprep.subr.mxu0 0.0
        %911 = vmatpush2.msra.mxu0 0.0
        %912 = vmatprep.subr.mxu0 0.0
        %913 = vmatpush2.msra.mxu0 0.0
        %914 = vmatprep.subr.mxu0 0.0
        %915 = vmatpush2.msra.mxu0 0.0
        %916 = vmatprep.subr.mxu0 0.0
        %917 = vmatpush2.msra.mxu0 0.0
        %918 = vmatprep.subr.mxu0 0.0
        %919 = vmatpush2.msra.mxu0 0.0
        %920 = vmatprep.subr.mxu0 0.0
        %921 = vmatpush2.msra.mxu0 0.0
        %922 = vmatprep.mubr.f32.mxu0 0.0
        %923 = vmatmul.mubr.f32.gmra.mxu0 %v834
        %v924 = vpop.f32.mrf.mxu0
        %v925 = vadd.f32 %v856, %v924
        %v926 = vpop.f32.mrf.mxu0
        %927 = vdwg.mxu0
        %928 = vst [vmem:[%s316] sm:$0xff] %v925
        %p929 = scmp.lt.s32.totalorder %s20, 1
        %s930 = scalar_select %p929, %s20, 1
        %s931 = smul.addr %s930, 8
        %s932 = scalar_lea.vmem %s7, %s931
        // Predicated region
        $region61: #{deep_fcnn_apply.1} parent=47 // pred_check
          %p933 = pneg %p190
        $region62: #{deep_fcnn_apply.1} parent=47 // pred_check_branch
          %935 = sbr.rel (%p933) target = $region64
        $region63: #{deep_fcnn_apply.1} parent=47 // pred_region
          _
        $region64: #{deep_fcnn_apply.1} parent=47 // pred_fallthru
          _
      $region48: #{deep_fcnn_apply.1} parent=5 // pred_fallthru
        _
      %p936 = scmp.le.s32.totalorder 2, %s15
      // Predicated region
      $region65: #{deep_fcnn_apply.1} parent=5 // pred_check
        %p937 = pneg %p936
      $region66: #{deep_fcnn_apply.1} parent=5 // pred_check_branch
        %939 = sbr.rel (%p937) target = $region68
      $region67: #{deep_fcnn_apply.1} parent=5 // pred_region
        %s940 = ssub.s32 %s15, 2
        // Predicated region
        $region69: #{deep_fcnn_apply.1} parent=67 // pred_check
          %p941 = pneg %p196
        $region70: #{deep_fcnn_apply.1} parent=67 // pred_check_branch
          %943 = sbr.rel (%p941) target = $region72
        $region71: #{deep_fcnn_apply.1} parent=67 // pred_region
          %p944 = scmp.lt.s32.totalorder %s21, 1
          %s945 = scalar_select %p944, %s21, 1
          %s946 = smul.addr %s945, 8
          %s947 = scalar_lea.vmem %s7, %s946
        $region72: #{deep_fcnn_apply.1} parent=67 // pred_fallthru
          _
      $region68: #{deep_fcnn_apply.1} parent=5 // pred_fallthru
        _
    $region6: #{deep_fcnn_apply.1} parent=1 // loop_footer
      %s19 = sadd.s32 1, %s15
    $region7: #{deep_fcnn_apply.1} parent=1 // loop_footer_branch
      %14 = sbr.rel target = $region3
    $region8: #{deep_fcnn_apply.1} parent=1 // loop_exit
      _
    %948 = vsyncpa [#allocation3], 1
    %s949 = scalar_lea.sflag [#allocation3], 1
    %950 = vsyncpa %s949, 1
    %951 = vsyncpa [#allocation5], 1

</llo_original>
